<compile_context>
chip_gen: v7x
topology: tpu7x:2x2x1
jax: 0.10.0
libtpu: 0.0.40
codegen_flags: <defaults>
</compile_context>

<pallas_src>
import functools
import math
from typing import NamedTuple, Optional

import jax
import jax.numpy as jnp
from jax.experimental import pallas as pl
from jax.experimental.pallas import tpu as pltpu


# --------------------------------------------------------------------------
# helpers
# --------------------------------------------------------------------------
def _round_up(v, mult):
    return ((v + mult - 1) // mult) * mult


def _largest_divisor_tile(padded_dim, unit, cap):
    """Largest multiple of `unit` that divides `padded_dim` and is <= cap."""
    cap = max(unit, min(cap, padded_dim))
    q = padded_dim // unit
    best = unit
    for d in range(1, q + 1):
        t = d * unit
        if t > cap:
            break
        if q % d == 0:
            best = t
    return best


# --------------------------------------------------------------------------
# kernels
# --------------------------------------------------------------------------
def _dense_kernel_single_k(x_ref, w_ref, b_ref, o_ref, *, activation):
    # Whole K fits in one tile: single MXU pass, no accumulator scratch.
    out = jnp.dot(x_ref[...], w_ref[...], preferred_element_type=jnp.float32)
    out = out + b_ref[...]  # (1, tn) broadcast, bias is f32
    if activation == "relu":
        out = jnp.maximum(out, 0.0)  # matches F.relu(x, inplace=True)
    o_ref[...] = out.astype(o_ref.dtype)


def _dense_kernel_multi_k(x_ref, w_ref, b_ref, o_ref, acc_ref, *, activation):
    k = pl.program_id(2)

    @pl.when(k == 0)
    def _init():
        acc_ref[...] = jnp.zeros_like(acc_ref)

    acc_ref[...] += jnp.dot(
        x_ref[...], w_ref[...], preferred_element_type=jnp.float32
    )

    @pl.when(k == pl.num_programs(2) - 1)
    def _epilogue():
        out = acc_ref[...] + b_ref[...]
        if activation == "relu":
            out = jnp.maximum(out, 0.0)
        o_ref[...] = out.astype(o_ref.dtype)


# --------------------------------------------------------------------------
# parameter preparation (one-time, weights are static)
# --------------------------------------------------------------------------
class DenseParams(NamedTuple):
    weight_padded: jax.Array  # (pk, pn) in compute dtype, padded to 128 multiples
    bias_padded: jax.Array    # (1, pn)  float32, padded to 128 multiple
    in_features: int
    out_features: int


def prepare_dense_params(weight_t, bias, compute_dtype=jnp.bfloat16):
    """Pad/cast the (in, out) weight and bias ONCE so the per-call path never
    touches the full weight with an XLA pad/convert."""
    in_f, out_f = weight_t.shape
    pk = _round_up(in_f, 128)
    pn = _round_up(out_f, 128)

    w = weight_t if compute_dtype is None else weight_t.astype(compute_dtype)
    if (pk, pn) != w.shape:
        w = jnp.pad(w, ((0, pk - in_f), (0, pn - out_f)))

    b = bias.astype(jnp.float32).reshape(1, out_f)
    if pn != out_f:
        b = jnp.pad(b, ((0, 0), (0, pn - out_f)))

    return DenseParams(w, b, in_f, out_f)


# --------------------------------------------------------------------------
# forward
# --------------------------------------------------------------------------
def dense(x, params: DenseParams, activation=None, k_tile_cap: Optional[int] = None):
    """Pallas equivalent of Dense.forward.

    x:          (..., in_features), any float dtype (output keeps this dtype)
    params:     DenseParams from prepare_dense_params()
    activation: None or "relu"
    k_tile_cap: optional override of the K-tile size (testing / tuning knob)
    """
    if activation not in (None, "relu"):
        # TODO(synk): other torch activations (gelu/sigmoid/...) could be
        # added to the epilogue; raise instead of silently ignoring them.
        raise ValueError(f"unsupported activation: {activation!r}")

    in_f, out_f = params.in_features, params.out_features
    assert x.shape[-1] == in_f, (x.shape, in_f)
    lead = x.shape[:-1]
    out_dtype = x.dtype

    cdt = params.weight_padded.dtype
    pk, pn = params.weight_padded.shape
    is_half = jnp.dtype(cdt).itemsize == 2 or jnp.dtype(out_dtype).itemsize == 2
    sub = 16 if is_half else 8

    # --- per-call activation prep (cast + pad only the activation) ---
    x2 = x.reshape(-1, in_f).astype(cdt)
    m = x2.shape[0]
    pm = _round_up(m, sub)
    if (pm, pk) != x2.shape:
        x2 = jnp.pad(x2, ((0, pm - m), (0, pk - in_f)))

    # --- tile selection: tiles are divisors of the padded dims ---
    tm = _largest_divisor_tile(pm, sub, 512)
    tn_cap = 1024 if is_half else 512
    tn = _largest_divisor_tile(pn, 128, tn_cap)

    tk_single_cap = 2048 if is_half else 1024
    tk_multi_cap = 1024 if is_half else 512
    if k_tile_cap is not None:
        tk = _largest_divisor_tile(pk, 128, k_tile_cap)
    elif pk <= tk_single_cap:
        tk = pk  # single K step: no accumulator, W never re-DMA'd across M
    else:
        tk = _largest_divisor_tile(pk, 128, tk_multi_cap)

    # Guarantee >=2 parallel tiles when feasible so v7x's two TensorCores both
    # get work (no effect on single-TC v5e/v6e).
    if (pm // tm) * (pn // tn) < 2:
        if pn // 128 >= 2:
            tn = _largest_divisor_tile(pn, 128, pn // 2)
        elif pm // sub >= 2:
            tm = _largest_divisor_tile(pm, sub, max(sub, pm // 2))

    kt = pk // tk

    # --- VMEM budget (double-buffered in/out + accumulator), explicit limit ---
    def _nbytes(shape, dtype):
        return math.prod(shape) * jnp.dtype(dtype).itemsize

    vmem_est = 2 * (
        _nbytes((tm, tk), cdt)
        + _nbytes((tk, tn), cdt)
        + _nbytes((1, tn), jnp.float32)
        + _nbytes((tm, tn), out_dtype)
    )
    if kt > 1:
        vmem_est += _nbytes((tm, tn), jnp.float32)
    vmem_limit = min(48 * 1024 * 1024, max(32 * 1024 * 1024, int(2 * vmem_est)))

    cost = pl.CostEstimate(
        flops=2 * m * in_f * out_f,
        transcendentals=0,
        bytes_accessed=(
            x2.size * jnp.dtype(cdt).itemsize
            + params.weight_padded.size * jnp.dtype(cdt).itemsize
            + params.bias_padded.size * 4
            + pm * pn * jnp.dtype(out_dtype).itemsize
        ),
    )

    if kt == 1:
        grid = (pn // tn, pm // tm)
        grid_spec = pltpu.PrefetchScalarGridSpec(
            num_scalar_prefetch=0,
            grid=grid,
            in_specs=[
                pl.BlockSpec((tm, tk), lambda j, i: (i, 0)),  # x tile
                pl.BlockSpec((tk, tn), lambda j, i: (0, j)),  # W tile
                pl.BlockSpec((1, tn), lambda j, i: (0, j)),   # bias tile
            ],
            out_specs=pl.BlockSpec((tm, tn), lambda j, i: (i, j)),
            scratch_shapes=[],
        )
        kernel = functools.partial(_dense_kernel_single_k, activation=activation)
        dim_sem = ("parallel", "parallel")
    else:
        grid = (pn // tn, pm // tm, kt)  # K reduction innermost
        grid_spec = pltpu.PrefetchScalarGridSpec(
            num_scalar_prefetch=0,
            grid=grid,
            in_specs=[
                pl.BlockSpec((tm, tk), lambda j, i, k: (i, k)),  # x tile
                pl.BlockSpec((tk, tn), lambda j, i, k: (k, j)),  # W tile
                pl.BlockSpec((1, tn), lambda j, i, k: (0, j)),   # bias tile
            ],
            out_specs=pl.BlockSpec((tm, tn), lambda j, i, k: (i, j)),
            scratch_shapes=[pltpu.VMEM((tm, tn), jnp.float32)],
        )
        kernel = functools.partial(_dense_kernel_multi_k, activation=activation)
        dim_sem = ("parallel", "parallel", "arbitrary")

    y = pl.pallas_call(
        kernel,
        out_shape=jax.ShapeDtypeStruct((pm, pn), out_dtype),
        grid_spec=grid_spec,
        compiler_params=pltpu.CompilerParams(
            dimension_semantics=dim_sem,
            vmem_limit_bytes=vmem_limit,
        ),
        cost_estimate=cost,
    )(x2, params.weight_padded, params.bias_padded)

    y = y[:m, :out_f]
    return y.reshape(*lead, out_f)


# --------------------------------------------------------------------------
# init matching nn.Linear defaults
# --------------------------------------------------------------------------
def init_dense_weights(key, in_features, out_features):
    """U(-1/sqrt(in), 1/sqrt(in)), weight stored transposed as (in, out)."""
    kw, kb = jax.random.split(key)
    bound = 1.0 / (in_features ** 0.5)
    weight_t = jax.random.uniform(
        kw, (in_features, out_features), jnp.float32, -bound, bound
    )
    bias = jax.random.uniform(kb, (out_features,), jnp.float32, -bound, bound)
    return weight_t, bias


if __name__ == "__main__":
    key = jax.random.PRNGKey(0)
    k_x1, k_p1, k_x2, k_p2, k_x3 = jax.random.split(key, 5)

    # --- test 1: small shape, activation=relu, default bf16 MXU inputs ---
    batch, seq, in_features, out_features = 2, 8, 32, 64
    x = jax.random.normal(k_x1, (batch, seq, in_features), jnp.float32)
    weight_t, bias = init_dense_weights(k_p1, in_features, out_features)

    params_bf16 = prepare_dense_params(weight_t, bias)  # bf16 MXU path (default)
    y = jax.block_until_ready(dense(x, params_bf16, activation="relu"))
    y_ref = jnp.maximum(x @ weight_t + bias, 0.0)
    assert y.shape == (batch, seq, out_features)
    assert jnp.allclose(y, y_ref, atol=5e-2, rtol=5e-2), "mismatch (bf16 default)"

    # --- test 2: non-power-of-two features, f32 compute, forced multi-K path ---
    b2, s2, in2, out2 = 4, 16, 640, 384
    xb = jax.random.normal(k_x2, (b2, s2, in2), jnp.float32)
    wtb, bb = init_dense_weights(k_p2, in2, out2)

    params_f32 = prepare_dense_params(wtb, bb, compute_dtype=None)  # opt-in f32
    yb = jax.block_until_ready(
        dense(xb, params_f32, activation=None, k_tile_cap=128)  # exercise accumulator
    )
    yb_ref = xb @ wtb + bb
    assert yb.shape == (b2, s2, out2)
    assert jnp.allclose(yb, yb_ref, atol=1e-4, rtol=1e-4), "mismatch (f32 multi-K)"

    # --- test 3: same layer, default bf16 single-K fast path + relu ---
    params2_bf16 = prepare_dense_params(wtb, bb)
    yc = jax.block_until_ready(dense(xb, params2_bf16, activation="relu"))
    yc_ref = jnp.maximum(yb_ref, 0.0)
    assert jnp.allclose(yc, yc_ref, atol=5e-2, rtol=5e-2), "mismatch (bf16 single-K)"

    # --- test 4: odd leading dims (M padded to sublane multiple) ---
    xd = jax.random.normal(k_x3, (3, 5, in_features), jnp.float32)
    yd = jax.block_until_ready(dense(xd, params_bf16, activation="relu"))
    yd_ref = jnp.maximum(xd @ weight_t + bias, 0.0)
    assert yd.shape == (3, 5, out_features)
    assert jnp.allclose(yd, yd_ref, atol=5e-2, rtol=5e-2), "mismatch (odd M pad)"

    print("KERNEL_OK")
</pallas_src>

<mosaic_0001>
module attributes {stable_mosaic.version = 11 : i64} {
  func.func @_dense_kernel_single_k(%arg0: i32, %arg1: i32, %arg2: memref<16x128xbf16, #tpu.memory_space<vmem>>, %arg3: memref<128x128xbf16, #tpu.memory_space<vmem>>, %arg4: memref<1x128xf32, #tpu.memory_space<vmem>>, %arg5: memref<16x128xf32, #tpu.memory_space<vmem>>) attributes {dimension_semantics = [#tpu.dimension_semantics<parallel>, #tpu.dimension_semantics<parallel>], iteration_bounds = array<i64: 1, 1>, scalar_prefetch = 0 : i64, scratch_operands = 0 : i64, tpu.core_type = #tpu.core_type<tc>, window_params = [{transform_indices = @transform_0, window_bounds = array<i64: 16, 128>}, {transform_indices = @transform_1, window_bounds = array<i64: 128, 128>}, {transform_indices = @transform_2, window_bounds = array<i64: 1, 128>}, {transform_indices = @transform_3, window_bounds = array<i64: 16, 128>}]} {
    %c0 = arith.constant 0 : index
    %c0_0 = arith.constant 0 : index
    %0 = vector.load %arg2[%c0, %c0_0] : memref<16x128xbf16, #tpu.memory_space<vmem>>, vector<16x128xbf16>
    %c0_1 = arith.constant 0 : index
    %c0_2 = arith.constant 0 : index
    %1 = vector.load %arg3[%c0_1, %c0_2] : memref<128x128xbf16, #tpu.memory_space<vmem>>, vector<128x128xbf16>
    %cst = arith.constant dense<0.000000e+00> : vector<16x128xf32>
    %2 = tpu.matmul %0, %1, %cst {dimension_numbers = #tpu.dot_dimension_numbers<[1], [0], [0], [1], [0, 0, 1, 1], [], []>} : vector<16x128xbf16>, vector<128x128xbf16>, vector<16x128xf32> -> vector<16x128xf32>
    %c0_3 = arith.constant 0 : index
    %c0_4 = arith.constant 0 : index
    %3 = vector.load %arg4[%c0_3, %c0_4] : memref<1x128xf32, #tpu.memory_space<vmem>>, vector<1x128xf32>
    %4 = vector.broadcast %3 : vector<1x128xf32> to vector<16x128xf32>
    %5 = arith.addf %2, %4 : vector<16x128xf32>
    %cst_5 = arith.constant 0.000000e+00 : f32
    %6 = vector.broadcast %cst_5 : f32 to vector<16x128xf32>
    %7 = arith.maximumf %5, %6 : vector<16x128xf32>
    %c0_6 = arith.constant 0 : index
    %c0_7 = arith.constant 0 : index
    %8 = vector.load %arg5[%c0_6, %c0_7] : memref<16x128xf32, #tpu.memory_space<vmem>>, vector<16x128xf32>
    tpu.vector_store %arg5[%c0_6, %c0_7], %7 {strides = array<i32>} : memref<16x128xf32, #tpu.memory_space<vmem>>, vector<16x128xf32>,
    return
  }
  func.func @transform_0(%arg0: i32, %arg1: i32) -> (i32, i32) {
    %c0_i32 = arith.constant 0 : i32
    %c0_i32_0 = arith.constant 0 : i32
    return %arg1, %c0_i32 : i32, i32
  }
  func.func @transform_1(%arg0: i32, %arg1: i32) -> (i32, i32) {
    %c0_i32 = arith.constant 0 : i32
    %c0_i32_0 = arith.constant 0 : i32
    return %c0_i32, %arg0 : i32, i32
  }
  func.func @transform_2(%arg0: i32, %arg1: i32) -> (i32, i32) {
    %c0_i32 = arith.constant 0 : i32
    %c0_i32_0 = arith.constant 0 : i32
    return %c0_i32, %arg0 : i32, i32
  }
  func.func @transform_3(%arg0: i32, %arg1: i32) -> (i32, i32) {
    %c0_i32 = arith.constant 0 : i32
    return %arg1, %arg0 : i32, i32
  }
}

</mosaic_0001>

<llo_original>
// kernel: tpu_custom_call.1
$region0: #{tpu_custom_call.1}
  #allocation0 [shape = 'u32[]', space=smem, size = 0x4, offset = 0x4, fixed_abs, tag = 'smem constant byte address 0x4 - core index']
  #allocation1 [shape = 'u32[144,128]{1,0:T(1,128)}', space=vmem, size = 0x12000, scoped, tag = 'internal scratch']
  %s0 = inlined_call_operand.hbm [shape: bf16[16,128], index: 0, kind: input, shape index: {}]
  %s1 = inlined_call_operand.hbm [shape: bf16[128,128], index: 1, kind: input, shape index: {}]
  %s2 = inlined_call_operand.vmem [shape: f32[1,128], index: 2, kind: input, shape index: {}]
  %s3 = inlined_call_operand.hbm [shape: f32[16,128], index: 3, kind: output, shape index: {}]
  %s4 = sld [smem:[#allocation0]]
  $region30: #{tpu_custom_call.1} parent=0
    _
  %s6 = ssub.s32 1, %s4
  %s7 = scalar_select 0, %s6, %s4
  $region1: #{tpu_custom_call.1} parent=0
    #allocation2 [shape = 'u8[4096]{0}', space=vmem, size = 0x1000, scoped, tag = 'input window, operand 0, single buffered']
    #allocation3 [shape = 's32[1]{0}', space=sflag, size = 0x4, scoped, tag = 'scoped memory for tpu_custom_call.1']
    #allocation4 [shape = 's32[1]{0}', space=sflag, size = 0x4, scoped, tag = 'scoped memory for tpu_custom_call.1']
    #allocation5 [shape = 'u8[32768]{0}', space=vmem, size = 0x8000, scoped, tag = 'input window, operand 1, single buffered']
    #allocation6 [shape = 's32[1]{0}', space=sflag, size = 0x4, scoped, tag = 'scoped memory for tpu_custom_call.1']
    #allocation7 [shape = 'u8[8192]{0}', space=vmem, size = 0x2000, scoped, tag = 'output window, operand 0, single buffered']
    %8 = vsyncpa [#allocation3], 0
    %9 = vsyncpa [#allocation6], 0
    %10 = vsyncpa [#allocation4], 0
    // Predicated region
    $region2: #{tpu_custom_call.1} parent=1 // pred_check
      _
    $region3: #{tpu_custom_call.1} parent=1 // pred_check_branch
      %12 = sbr.rel (0) target = $region5
    $region4: #{tpu_custom_call.1} parent=1 // pred_region
      %s14 = ssub.s32 128, 128
      %15 = vsyncadd [#allocation3], %s14
      %s16 = sshll.u32 [#allocation2], 4
      %s17 = int_to_ptr.vmem [resolvable:$true] %s16
      %22 = dma.hbm_to_vmem [thread:$0]  %s0, 128, %s17, [#allocation3], 64, 64, 4
    $region5: #{tpu_custom_call.1} parent=1 // pred_fallthru
      _
    // Predicated region
    $region6: #{tpu_custom_call.1} parent=1 // pred_check
      _
    $region7: #{tpu_custom_call.1} parent=1 // pred_check_branch
      %24 = sbr.rel (0) target = $region9
    $region8: #{tpu_custom_call.1} parent=1 // pred_region
      %s26 = ssub.s32 1024, 1024
      %27 = vsyncadd [#allocation6], %s26
      %s28 = sshll.u32 [#allocation5], 4
      %s29 = int_to_ptr.vmem [resolvable:$true] %s28
      %34 = dma.hbm_to_vmem [thread:$0]  %s1, 1024, %s29, [#allocation6], 64, 64, 4
    $region9: #{tpu_custom_call.1} parent=1 // pred_fallthru
      _
    // Predicated region
    $region10: #{tpu_custom_call.1} parent=1 // pred_check
      _
    $region11: #{tpu_custom_call.1} parent=1 // pred_check_branch
      %36 = sbr.rel (0) target = $region13
    $region12: #{tpu_custom_call.1} parent=1 // pred_region
      _
    $region13: #{tpu_custom_call.1} parent=1 // pred_fallthru
      _
    // Predicated region
    $region14: #{tpu_custom_call.1} parent=1 // pred_check
      _
    $region15: #{tpu_custom_call.1} parent=1 // pred_check_branch
      %38 = sbr.rel (0) target = $region17
    $region16: #{tpu_custom_call.1} parent=1 // pred_region
      %39 = dma.done [#allocation3], 128
    $region17: #{tpu_custom_call.1} parent=1 // pred_fallthru
      _
    // Predicated region
    $region18: #{tpu_custom_call.1} parent=1 // pred_check
      _
    $region19: #{tpu_custom_call.1} parent=1 // pred_check_branch
      %41 = sbr.rel (0) target = $region21
    $region20: #{tpu_custom_call.1} parent=1 // pred_region
      %42 = dma.done [#allocation6], 1024
    $region21: #{tpu_custom_call.1} parent=1 // pred_fallthru
      _
    %v44 = vld [vmem:[#allocation2] sm:$0xf]
    %v45 = vld [vmem:[#allocation2 + $0x4] sm:$0xf]
    %v46 = vld [vmem:[#allocation5] sm:$0xf]
    %v47 = vld [vmem:[#allocation5 + $0x4] sm:$0xf]
    %v48 = vld [vmem:[#allocation5 + $0x8] sm:$0xf]
    %v49 = vld [vmem:[#allocation5 + $0xc] sm:$0xf]
    %v50 = vld [vmem:[#allocation5 + $0x10] sm:$0xf]
    %v51 = vld [vmem:[#allocation5 + $0x14] sm:$0xf]
    %v52 = vld [vmem:[#allocation5 + $0x18] sm:$0xf]
    %v53 = vld [vmem:[#allocation5 + $0x1c] sm:$0xf]
    %v54 = vld [vmem:[#allocation5 + $0x20] sm:$0xf]
    %v55 = vld [vmem:[#allocation5 + $0x24] sm:$0xf]
    %v56 = vld [vmem:[#allocation5 + $0x28] sm:$0xf]
    %v57 = vld [vmem:[#allocation5 + $0x2c] sm:$0xf]
    %v58 = vld [vmem:[#allocation5 + $0x30] sm:$0xf]
    %v59 = vld [vmem:[#allocation5 + $0x34] sm:$0xf]
    %v60 = vld [vmem:[#allocation5 + $0x38] sm:$0xf]
    %v61 = vld [vmem:[#allocation5 + $0x3c] sm:$0xf]
    %v62 = vld [vmem:[%s2] sm:$0x1]
    %v64 = vlaneseq
    %v65 = vshrl.u32 %v64, 7
    %v66 = vsub.s32 0, %v65
    %v67 = vrot.slane %v62, %v66
    %v71 = vunpack.c.l.b16 %v44
    %v72 = vunpack.c.l.b16 %v45
    %v73 = vpack.c.b16 %v72, %v71
    %v91 = vunpack.c.l.b16 %v46
    %v92 = vunpack.c.l.b16 %v47
    %v93 = vunpack.c.l.b16 %v48
    %v94 = vunpack.c.l.b16 %v49
    %v95 = vunpack.c.l.b16 %v50
    %v96 = vunpack.c.l.b16 %v51
    %v97 = vunpack.c.l.b16 %v52
    %v98 = vunpack.c.l.b16 %v53
    %v99 = vunpack.c.l.b16 %v54
    %v100 = vunpack.c.l.b16 %v55
    %v101 = vunpack.c.l.b16 %v56
    %v102 = vunpack.c.l.b16 %v57
    %v103 = vunpack.c.l.b16 %v58
    %v104 = vunpack.c.l.b16 %v59
    %v105 = vunpack.c.l.b16 %v60
    %v106 = vunpack.c.l.b16 %v61
    %v107 = vpack.c.b16 %v92, %v91
    %v108 = vpack.c.b16 %v94, %v93
    %v109 = vpack.c.b16 %v96, %v95
    %v110 = vpack.c.b16 %v98, %v97
    %v111 = vpack.c.b16 %v100, %v99
    %v112 = vpack.c.b16 %v102, %v101
    %v113 = vpack.c.b16 %v104, %v103
    %v114 = vpack.c.b16 %v106, %v105
    %123 = vmatprep.subr.bf16.mxu0 0
    %124 = vmatpush1.bf16.msra.mxu0 %v107
    %125 = vmatprep.subr.bf16.mxu0 0
    %126 = vmatpush1.bf16.msra.mxu0 %v108
    %127 = vmatprep.subr.bf16.mxu0 0
    %128 = vmatpush1.bf16.msra.mxu0 %v109
    %129 = vmatprep.subr.bf16.mxu0 0
    %130 = vmatpush1.bf16.msra.mxu0 %v110
    %131 = vmatprep.subr.bf16.mxu0 0
    %132 = vmatpush1.bf16.msra.mxu0 %v111
    %133 = vmatprep.subr.bf16.mxu0 0
    %134 = vmatpush1.bf16.msra.mxu0 %v112
    %135 = vmatprep.subr.bf16.mxu0 0
    %136 = vmatpush1.bf16.msra.mxu0 %v113
    %137 = vmatprep.subr.bf16.mxu0 0
    %138 = vmatpush1.bf16.msra.mxu0 %v114
    %139 = vmatprep.subr.bf16.mxu0 0
    %140 = vmatpush1.bf16.msra.mxu0 0
    %141 = vmatprep.subr.bf16.mxu0 0
    %142 = vmatpush1.bf16.msra.mxu0 0
    %143 = vmatprep.subr.bf16.mxu0 0
    %144 = vmatpush1.bf16.msra.mxu0 0
    %145 = vmatprep.subr.bf16.mxu0 0
    %146 = vmatpush1.bf16.msra.mxu0 0
    %147 = vmatprep.subr.bf16.mxu0 0
    %148 = vmatpush1.bf16.msra.mxu0 0
    %149 = vmatprep.subr.bf16.mxu0 0
    %150 = vmatpush1.bf16.msra.mxu0 0
    %151 = vmatprep.subr.bf16.mxu0 0
    %152 = vmatpush1.bf16.msra.mxu0 0
    %153 = vmatprep.subr.bf16.mxu0 0
    %154 = vmatpush1.bf16.msra.mxu0 0
    %155 = vmatprep.mubr.bf16.mxu0 0
    %156 = vmatmul.mubr.bf16.gmra.mrb[0].mxu0 %v73
    %v157 = vpop.f32.mrb[0].mxu0
    %v158 = vadd.f32 %v67, %v157
    %v159 = vpop.f32.mrb[0].mxu0
    %v160 = vpop.f32.mrb[0].mxu0
    %v161 = vadd.f32 %v67, %v160
    %v162 = vpop.f32.mrb[0].mxu0
    %163 = vdwg.mxu0
    %v164 = vmax.f32 %v158, 0.0
    %v165 = vmax.f32 %v161, 0.0
    %166 = vst [vmem:[#allocation7] sm:$0xff] %v164
    %167 = vst [vmem:[#allocation7 + $0x8] sm:$0xff] %v165
    // Predicated region
    $region22: #{tpu_custom_call.1} parent=1 // pred_check
      _
    $region23: #{tpu_custom_call.1} parent=1 // pred_check_branch
      %169 = sbr.rel (0) target = $region25
    $region24: #{tpu_custom_call.1} parent=1 // pred_region
      %s171 = ssub.s32 256, 256
      %172 = vsyncadd [#allocation4], %s171
      %s173 = sshll.u32 [#allocation7], 4
      %s174 = int_to_ptr.vmem [resolvable:$true] %s173
      %179 = dma.vmem_to_hbm [thread:$0]  %s174, 256, %s3, [#allocation4], 128, 128, 8
    $region25: #{tpu_custom_call.1} parent=1 // pred_fallthru
      _
    // Predicated region
    $region26: #{tpu_custom_call.1} parent=1 // pred_check
      _
    $region27: #{tpu_custom_call.1} parent=1 // pred_check_branch
      %181 = sbr.rel (0) target = $region29
    $region28: #{tpu_custom_call.1} parent=1 // pred_region
      %182 = dma.done [#allocation4], 256
    $region29: #{tpu_custom_call.1} parent=1 // pred_fallthru
      _
    %183 = vsyncpa [#allocation3], 1
    %184 = vsyncpa [#allocation6], 1
    %185 = vsyncpa [#allocation4], 1

</llo_original>
